<compile_context>
chip_gen: v5e
topology: v5e:2x2
jax: 0.10.0
libtpu: 0.0.40
codegen_flags: <defaults>
</compile_context>

<pallas_src>
import math
import numpy as np
import jax
import jax.numpy as jnp
from jax.experimental import pallas as pl
from jax.experimental.pallas import tpu as pltpu


# ----------------------------- Pallas kernel ------------------------------ #
def _peg_conv_kernel(ab_ref, adj_ref, pi_ref, pjT_ref, pisq_ref, pjsq_ref,
                     x_ref, w_ref, b_ref, o_ref, acc_ref):
    """One PEGconv layer, one (row-tile, neighbor-tile) grid step.

    ab_ref    : SMEM (2,)          folded edge_mlp affine params [a, b]
    adj_ref   : VMEM (TM, TK) bf16 normalized adjacency block
    pi_ref    : VMEM (TM, PE) f32  positional encodings of the row tile (p_i)
    pjT_ref   : VMEM (PE, TK) f32  positional encodings of the neighbor tile, transposed (p_j)
    pisq_ref  : VMEM (TM, 1)  f32  ||p_i||^2 (precomputed in wrapper)
    pjsq_ref  : VMEM (1, TK)  f32  ||p_j||^2 (precomputed in wrapper)
    x_ref     : VMEM (TK, Fp) bf16 node features of the neighbor tile (lane-padded)
    w_ref     : VMEM (Fp, Fp) f32  linear weight (zero-padded, torch weight transposed)
    b_ref     : VMEM (1, Fp)  f32  linear bias (zero-padded)
    o_ref     : VMEM (TM, Fp) bf16 output rows (lane-dense)
    acc_ref   : VMEM (TM, Fp) f32  scratch accumulator for aggregated messages
    """
    k = pl.program_id(1)

    @pl.when(k == 0)
    def _init():
        acc_ref[...] = jnp.zeros_like(acc_ref)

    a = ab_ref[0]
    b = ab_ref[1]

    # Pairwise distances ||p_i - p_j||_2 for this block (MXU for the cross term).
    cross = jnp.dot(pi_ref[...], pjT_ref[...], preferred_element_type=jnp.float32)  # (TM, TK)
    dsq = jnp.maximum(pisq_ref[...] + pjsq_ref[...] - 2.0 * cross, 0.0)
    dist = jnp.sqrt(dsq)

    # Folded edge_mlp (a*d + b) followed by Sigmoid, written in tanh form:
    # sigmoid(z) == 0.5*(tanh(0.5*z)+1)  -> single EUP op instead of exp + reciprocal.
    z = a * dist + b
    pe_w = 0.5 * (jnp.tanh(0.5 * z) + 1.0)                                           # (TM, TK)

    # Weight by gcn_norm adjacency (zero where no edge) and aggregate messages.
    # bf16 MXU operands, f32 accumulation.
    w_edge = (pe_w * adj_ref[...].astype(jnp.float32)).astype(x_ref.dtype)
    acc_ref[...] += jnp.dot(w_edge, x_ref[...], preferred_element_type=jnp.float32)  # (TM, Fp)

    @pl.when(k == pl.num_programs(1) - 1)
    def _finalize():
        out = jnp.dot(acc_ref[...], w_ref[...],
                      preferred_element_type=jnp.float32) + b_ref[...]
        o_ref[...] = out.astype(o_ref.dtype)


# ------------------------------- wrappers ---------------------------------- #
def _choose_tile_m(n):
    """Row tile: multiple of 8, <=256, divides N, keeps >=2 grid steps when possible."""
    if n % 8 != 0:
        return n                                   # full-extent block is always legal
    tm = min(n, 256)
    tm -= tm % 8
    if n // tm < 2 and n >= 16:                    # keep >=2 parallel steps (v7x has 2 TCs)
        tm = max(8, (n // 2) - ((n // 2) % 8))
    while n % tm != 0:
        tm -= 8
    return max(tm, 8)


def _choose_tile_k(n):
    """Neighbor tile: full N for small graphs, else a 128-multiple divisor."""
    if n <= 1024:
        return n
    for tk in (1024, 512, 256, 128):
        if n % tk == 0:
            return tk
    return n


def peg_conv(x_pad, adj_bf16, p, pT, pi_sq, pj_sq, w_pad, b_pad, edge_a, edge_b,
             *, tile_m, tile_k):
    """One PEGconv layer on padded/bf16 operands. x_pad:(N,Fp) -> (N,Fp)."""
    N, Fp = x_pad.shape
    PE = p.shape[1]
    assert N % tile_m == 0 and N % tile_k == 0

    ab = jnp.stack([edge_a, edge_b]).astype(jnp.float32)             # (2,) scalars -> SMEM

    return pl.pallas_call(
        _peg_conv_kernel,
        out_shape=jax.ShapeDtypeStruct((N, Fp), x_pad.dtype),
        grid=(N // tile_m, N // tile_k),
        in_specs=[
            pl.BlockSpec(memory_space=pltpu.MemorySpace.SMEM),        # ab (folded edge_mlp)
            pl.BlockSpec((tile_m, tile_k), lambda i, k: (i, k)),      # adjacency block (bf16)
            pl.BlockSpec((tile_m, PE), lambda i, k: (i, 0)),          # p_i rows
            pl.BlockSpec((PE, tile_k), lambda i, k: (0, k)),          # p_j cols (transposed)
            pl.BlockSpec((tile_m, 1), lambda i, k: (i, 0)),           # ||p_i||^2 (hoisted)
            pl.BlockSpec((1, tile_k), lambda i, k: (0, k)),           # ||p_j||^2 (hoisted)
            pl.BlockSpec((tile_k, Fp), lambda i, k: (k, 0)),          # x block (bf16, padded)
            pl.BlockSpec((Fp, Fp), lambda i, k: (0, 0)),              # linear weight (padded)
            pl.BlockSpec((1, Fp), lambda i, k: (0, 0)),               # linear bias (padded)
        ],
        out_specs=pl.BlockSpec((tile_m, Fp), lambda i, k: (i, 0)),    # lane-dense output
        scratch_shapes=[pltpu.VMEM((tile_m, Fp), jnp.float32)],       # agg accumulator
        compiler_params=pltpu.CompilerParams(
            dimension_semantics=("parallel", "arbitrary"),
            vmem_limit_bytes=48 * 1024 * 1024,                        # safe on v5e/v6e/v7x
        ),
    )(ab, adj_bf16, p, pT, pi_sq, pj_sq, x_pad, w_pad, b_pad)


def peg_forward(x, adj_norm, embeddings, params, *, tile_m=None, tile_k=None):
    """PEG.forward: chain of PEGconv layers (no relu / dropout in the given forward)."""
    N, f_in = x.shape
    out_ch = params[-1]["w"].shape[1]
    feat_dims = [f_in] + [layer["w"].shape[1] for layer in params]
    f_pad = max(128, ((max(feat_dims) + 127) // 128) * 128)          # lane-dense feature dim

    tile_m = _choose_tile_m(N) if tile_m is None else tile_m
    tile_k = _choose_tile_k(N) if tile_k is None else tile_k

    # Layer-invariant precompute (hoisted out of the kernel).
    p = embeddings.astype(jnp.float32)
    pT = jnp.transpose(p)
    pi_sq = jnp.sum(p * p, axis=1, keepdims=True)                    # (N, 1)
    pj_sq = jnp.transpose(pi_sq)                                     # (1, N)
    adj_bf16 = adj_norm.astype(jnp.bfloat16)                         # streamed MXU operand

    # Zero-pad features/weights to f_pad lanes; intermediates stay padded + bf16.
    x_pad = jnp.zeros((N, f_pad), jnp.bfloat16).at[:, :f_in].set(x.astype(jnp.bfloat16))

    for layer in params:
        fi, fo = layer["w"].shape
        w_pad = jnp.zeros((f_pad, f_pad), jnp.float32).at[:fi, :fo].set(layer["w"])
        b_pad = jnp.zeros((1, f_pad), jnp.float32).at[0, :fo].set(layer["b"])
        x_pad = peg_conv(x_pad, adj_bf16, p, pT, pi_sq, pj_sq, w_pad, b_pad,
                         layer["edge_a"], layer["edge_b"],
                         tile_m=tile_m, tile_k=tile_k)

    return x_pad[:, :out_ch].astype(jnp.float32)


# ------------------------------ glue / setup ------------------------------ #
def gcn_norm_dense(adj):
    """gcn_norm with add_self_loops=True, improved=False, on a dense adjacency."""
    n = adj.shape[0]
    a_hat = adj + jnp.eye(n, dtype=adj.dtype)
    deg = jnp.sum(a_hat, axis=1)
    dinv = jax.lax.rsqrt(deg)                                        # deg >= 1 (self loops)
    return a_hat * dinv[:, None] * dinv[None, :]


def _init_linear(key, fan_in, fan_out):
    """Deterministic torch.nn.Linear-style init: U(-1/sqrt(fan_in), 1/sqrt(fan_in))."""
    kw, kb = jax.random.split(key)
    bound = 1.0 / math.sqrt(fan_in)
    w = jax.random.uniform(kw, (fan_in, fan_out), jnp.float32, -bound, bound)
    b = jax.random.uniform(kb, (fan_out,), jnp.float32, -bound, bound)
    return w, b


def init_peg_conv_params(key, fin, fout):
    k_lin, k_m1, k_m2 = jax.random.split(key, 3)
    w, b = _init_linear(k_lin, fin, fout)                            # lin: (Fin,Fout), (Fout,)
    w1, b1 = _init_linear(k_m1, 1, 32)                               # edge_mlp Linear(1,32)
    w2, b2 = _init_linear(k_m2, 32, 1)                               # edge_mlp Linear(32,1)
    # Exact fold of Linear(1,32) -> Linear(32,1) (no nonlinearity between) into a*d + b.
    edge_a = jnp.dot(w1[0], w2[:, 0])
    edge_b = jnp.dot(b1, w2[:, 0]) + b2[0]
    return {"w": w, "b": b, "edge_a": edge_a, "edge_b": edge_b}


def peg_conv_ref(x, adj_norm, p, layer):
    """Pure-JAX f32 reference of one PEGconv layer (for a correctness check)."""
    diff = p[:, None, :] - p[None, :, :]
    dist = jnp.sqrt(jnp.sum(diff * diff, axis=-1))
    pe_w = jax.nn.sigmoid(layer["edge_a"] * dist + layer["edge_b"])
    agg = (pe_w * adj_norm) @ x
    return agg @ layer["w"] + layer["b"]


if __name__ == "__main__":
    key = jax.random.PRNGKey(0)
    N, in_ch, hid_ch, out_ch, pe_dim, num_layers = 64, 16, 32, 16, 8, 3

    k_x, k_p, k_adj, k_par = jax.random.split(key, 4)
    x = jax.random.normal(k_x, (N, in_ch), jnp.float32)
    embeddings = jax.random.normal(k_p, (N, pe_dim), jnp.float32)

    # Random symmetric adjacency (no self loops); gcn_norm adds them.
    a = (jax.random.uniform(k_adj, (N, N)) < 0.1).astype(jnp.float32)
    a = jnp.maximum(a, a.T) * (1.0 - jnp.eye(N, dtype=jnp.float32))
    adj_norm = gcn_norm_dense(a)                                     # cached=True equivalent

    # PEG layer stack: in->hid, (hid->hid)*(num_layers-2), hid->out.
    layer_dims = [(in_ch, hid_ch)] + [(hid_ch, hid_ch)] * (num_layers - 2) + [(hid_ch, out_ch)]
    keys = jax.random.split(k_par, num_layers)
    params = [init_peg_conv_params(keys[i], fi, fo) for i, (fi, fo) in enumerate(layer_dims)]

    out = peg_forward(x, adj_norm, embeddings, params)
    out = jax.block_until_ready(out)

    # Correctness check against a pure-JAX f32 reference of the same forward
    # (kernel streams adj/x/activations in bf16 -> slightly looser tolerance).
    ref = x
    for layer in params:
        ref = peg_conv_ref(ref, adj_norm, embeddings, layer)
    assert out.shape == (N, out_ch)
    np.testing.assert_allclose(np.asarray(out), np.asarray(ref), rtol=2e-2, atol=2e-2)

    print("KERNEL_OK")
</pallas_src>

<mosaic_0001>
module attributes {stable_mosaic.version = 11 : i64} {
  func.func @_peg_conv_kernel(%arg0: i32, %arg1: i32, %arg2: memref<2xf32, #tpu.memory_space<smem>>, %arg3: memref<32x64xbf16, #tpu.memory_space<vmem>>, %arg4: memref<32x8xf32, #tpu.memory_space<vmem>>, %arg5: memref<8x64xf32, #tpu.memory_space<vmem>>, %arg6: memref<32x1xf32, #tpu.memory_space<vmem>>, %arg7: memref<1x64xf32, #tpu.memory_space<vmem>>, %arg8: memref<64x128xbf16, #tpu.memory_space<vmem>>, %arg9: memref<128x128xf32, #tpu.memory_space<vmem>>, %arg10: memref<1x128xf32, #tpu.memory_space<vmem>>, %arg11: memref<32x128xbf16, #tpu.memory_space<vmem>>, %arg12: memref<32x128xf32, #tpu.memory_space<vmem>>) attributes {dimension_semantics = [#tpu.dimension_semantics<parallel>, #tpu.dimension_semantics<arbitrary>], iteration_bounds = array<i64: 2, 1>, scalar_prefetch = 0 : i64, scratch_operands = 1 : i64, tpu.core_type = #tpu.core_type<tc>, window_params = [{transform_indices = @transform_0, window_bounds = array<i64: 2>}, {transform_indices = @transform_1, window_bounds = array<i64: 32, 64>}, {transform_indices = @transform_2, window_bounds = array<i64: 32, 8>}, {transform_indices = @transform_3, window_bounds = array<i64: 8, 64>}, {transform_indices = @transform_4, window_bounds = array<i64: 32, 1>}, {transform_indices = @transform_5, window_bounds = array<i64: 1, 64>}, {transform_indices = @transform_6, window_bounds = array<i64: 64, 128>}, {pipeline_mode = #tpu.pipeline_mode<synchronous>, transform_indices = @transform_7, window_bounds = array<i64: 128, 128>}, {pipeline_mode = #tpu.pipeline_mode<synchronous>, transform_indices = @transform_8, window_bounds = array<i64: 1, 128>}, {transform_indices = @transform_9, window_bounds = array<i64: 32, 128>}]} {
    %c0_i32 = arith.constant 0 : i32
    %0 = arith.cmpi eq, %arg1, %c0_i32 : i32
    %1 = arith.extui %0 : i1 to i32
    %c0_i32_0 = arith.constant 0 : i32
    %2 = arith.cmpi ne, %1, %c0_i32_0 : i32
    scf.if %2 {
      %cst_25 = arith.constant 0.000000e+00 : f32
      %42 = vector.broadcast %cst_25 : f32 to vector<32x128xf32>
      %c0_26 = arith.constant 0 : index
      %c0_27 = arith.constant 0 : index
      %43 = vector.load %arg12[%c0_26, %c0_27] : memref<32x128xf32, #tpu.memory_space<vmem>>, vector<32x128xf32>
      tpu.vector_store %arg12[%c0_26, %c0_27], %42 {strides = array<i32>} : memref<32x128xf32, #tpu.memory_space<vmem>>, vector<32x128xf32>,
    } else {
    }
    %c0 = arith.constant 0 : index
    %3 = memref.load %arg2[%c0] : memref<2xf32, #tpu.memory_space<smem>>
    %c1 = arith.constant 1 : index
    %4 = memref.load %arg2[%c1] : memref<2xf32, #tpu.memory_space<smem>>
    %c0_1 = arith.constant 0 : index
    %c0_2 = arith.constant 0 : index
    %5 = vector.load %arg4[%c0_1, %c0_2] : memref<32x8xf32, #tpu.memory_space<vmem>>, vector<32x8xf32>
    %c0_3 = arith.constant 0 : index
    %c0_4 = arith.constant 0 : index
    %6 = vector.load %arg5[%c0_3, %c0_4] : memref<8x64xf32, #tpu.memory_space<vmem>>, vector<8x64xf32>
    %cst = arith.constant dense<0.000000e+00> : vector<32x64xf32>
    %7 = tpu.matmul %5, %6, %cst {dimension_numbers = #tpu.dot_dimension_numbers<[1], [0], [0], [1], [0, 0, 1, 1], [], []>} : vector<32x8xf32>, vector<8x64xf32>, vector<32x64xf32> -> vector<32x64xf32>
    %c0_5 = arith.constant 0 : index
    %c0_6 = arith.constant 0 : index
    %8 = vector.load %arg6[%c0_5, %c0_6] : memref<32x1xf32, #tpu.memory_space<vmem>>, vector<32x1xf32>
    %c0_7 = arith.constant 0 : index
    %c0_8 = arith.constant 0 : index
    %9 = vector.load %arg7[%c0_7, %c0_8] : memref<1x64xf32, #tpu.memory_space<vmem>>, vector<1x64xf32>
    %10 = vector.broadcast %8 : vector<32x1xf32> to vector<32x64xf32>
    %11 = vector.broadcast %9 : vector<1x64xf32> to vector<32x64xf32>
    %12 = arith.addf %10, %11 : vector<32x64xf32>
    %cst_9 = arith.constant 2.000000e+00 : f32
    %13 = vector.broadcast %cst_9 : f32 to vector<32x64xf32>
    %14 = arith.mulf %13, %7 : vector<32x64xf32>
    %15 = arith.subf %12, %14 : vector<32x64xf32>
    %cst_10 = arith.constant 0.000000e+00 : f32
    %16 = vector.broadcast %cst_10 : f32 to vector<32x64xf32>
    %17 = arith.maximumf %15, %16 : vector<32x64xf32>
    %18 = math.sqrt %17 : vector<32x64xf32>
    %19 = vector.broadcast %3 : f32 to vector<32x64xf32>
    %20 = arith.mulf %19, %18 : vector<32x64xf32>
    %21 = vector.broadcast %4 : f32 to vector<32x64xf32>
    %22 = arith.addf %20, %21 : vector<32x64xf32>
    %cst_11 = arith.constant 5.000000e-01 : f32
    %23 = vector.broadcast %cst_11 : f32 to vector<32x64xf32>
    %24 = arith.mulf %23, %22 : vector<32x64xf32>
    %25 = math.tanh %24 : vector<32x64xf32>
    %cst_12 = arith.constant 1.000000e+00 : f32
    %26 = vector.broadcast %cst_12 : f32 to vector<32x64xf32>
    %27 = arith.addf %25, %26 : vector<32x64xf32>
    %cst_13 = arith.constant 5.000000e-01 : f32
    %28 = vector.broadcast %cst_13 : f32 to vector<32x64xf32>
    %29 = arith.mulf %28, %27 : vector<32x64xf32>
    %c0_14 = arith.constant 0 : index
    %c0_15 = arith.constant 0 : index
    %30 = vector.load %arg3[%c0_14, %c0_15] : memref<32x64xbf16, #tpu.memory_space<vmem>>, vector<32x64xbf16>
    %31 = arith.extf %30 : vector<32x64xbf16> to vector<32x64xf32>
    %32 = arith.mulf %29, %31 : vector<32x64xf32>
    %33 = arith.truncf %32 : vector<32x64xf32> to vector<32x64xbf16>
    %c0_16 = arith.constant 0 : index
    %c0_17 = arith.constant 0 : index
    %34 = vector.load %arg12[%c0_16, %c0_17] : memref<32x128xf32, #tpu.memory_space<vmem>>, vector<32x128xf32>
    %c0_18 = arith.constant 0 : index
    %c0_19 = arith.constant 0 : index
    %35 = vector.load %arg8[%c0_18, %c0_19] : memref<64x128xbf16, #tpu.memory_space<vmem>>, vector<64x128xbf16>
    %cst_20 = arith.constant dense<0.000000e+00> : vector<32x128xf32>
    %36 = tpu.matmul %33, %35, %cst_20 {dimension_numbers = #tpu.dot_dimension_numbers<[1], [0], [0], [1], [0, 0, 1, 1], [], []>} : vector<32x64xbf16>, vector<64x128xbf16>, vector<32x128xf32> -> vector<32x128xf32>
    %37 = arith.addf %34, %36 : vector<32x128xf32>
    %c0_21 = arith.constant 0 : index
    %c0_22 = arith.constant 0 : index
    %38 = vector.load %arg12[%c0_21, %c0_22] : memref<32x128xf32, #tpu.memory_space<vmem>>, vector<32x128xf32>
    tpu.vector_store %arg12[%c0_21, %c0_22], %37 {strides = array<i32>} : memref<32x128xf32, #tpu.memory_space<vmem>>, vector<32x128xf32>,
    %c0_i32_23 = arith.constant 0 : i32
    %39 = arith.cmpi eq, %arg1, %c0_i32_23 : i32
    %40 = arith.extui %39 : i1 to i32
    %c0_i32_24 = arith.constant 0 : i32
    %41 = arith.cmpi ne, %40, %c0_i32_24 : i32
    scf.if %41 {
      %c0_25 = arith.constant 0 : index
      %c0_26 = arith.constant 0 : index
      %42 = vector.load %arg12[%c0_25, %c0_26] : memref<32x128xf32, #tpu.memory_space<vmem>>, vector<32x128xf32>
      %c0_27 = arith.constant 0 : index
      %c0_28 = arith.constant 0 : index
      %43 = vector.load %arg9[%c0_27, %c0_28] : memref<128x128xf32, #tpu.memory_space<vmem>>, vector<128x128xf32>
      %cst_29 = arith.constant dense<0.000000e+00> : vector<32x128xf32>
      %44 = tpu.matmul %42, %43, %cst_29 {dimension_numbers = #tpu.dot_dimension_numbers<[1], [0], [0], [1], [0, 0, 1, 1], [], []>} : vector<32x128xf32>, vector<128x128xf32>, vector<32x128xf32> -> vector<32x128xf32>
      %c0_30 = arith.constant 0 : index
      %c0_31 = arith.constant 0 : index
      %45 = vector.load %arg10[%c0_30, %c0_31] : memref<1x128xf32, #tpu.memory_space<vmem>>, vector<1x128xf32>
      %46 = vector.broadcast %45 : vector<1x128xf32> to vector<32x128xf32>
      %47 = arith.addf %44, %46 : vector<32x128xf32>
      %48 = arith.truncf %47 : vector<32x128xf32> to vector<32x128xbf16>
      %c0_32 = arith.constant 0 : index
      %c0_33 = arith.constant 0 : index
      %49 = vector.load %arg11[%c0_32, %c0_33] : memref<32x128xbf16, #tpu.memory_space<vmem>>, vector<32x128xbf16>
      tpu.vector_store %arg11[%c0_32, %c0_33], %48 {strides = array<i32>} : memref<32x128xbf16, #tpu.memory_space<vmem>>, vector<32x128xbf16>,
    } else {
    }
    return
  }
  func.func @transform_0(%arg0: i32, %arg1: i32) -> i32 {
    %c0_i32 = arith.constant 0 : i32
    %c0_i32_0 = arith.constant 0 : i32
    return %c0_i32 : i32
  }
  func.func @transform_1(%arg0: i32, %arg1: i32) -> (i32, i32) {
    %c0_i32 = arith.constant 0 : i32
    return %arg0, %arg1 : i32, i32
  }
  func.func @transform_2(%arg0: i32, %arg1: i32) -> (i32, i32) {
    %c0_i32 = arith.constant 0 : i32
    %c0_i32_0 = arith.constant 0 : i32
    return %arg0, %c0_i32 : i32, i32
  }
  func.func @transform_3(%arg0: i32, %arg1: i32) -> (i32, i32) {
    %c0_i32 = arith.constant 0 : i32
    %c0_i32_0 = arith.constant 0 : i32
    return %c0_i32, %arg1 : i32, i32
  }
  func.func @transform_4(%arg0: i32, %arg1: i32) -> (i32, i32) {
    %c0_i32 = arith.constant 0 : i32
    %c0_i32_0 = arith.constant 0 : i32
    return %arg0, %c0_i32 : i32, i32
  }
  func.func @transform_5(%arg0: i32, %arg1: i32) -> (i32, i32) {
    %c0_i32 = arith.constant 0 : i32
    %c0_i32_0 = arith.constant 0 : i32
    return %c0_i32, %arg1 : i32, i32
  }
  func.func @transform_6(%arg0: i32, %arg1: i32) -> (i32, i32) {
    %c0_i32 = arith.constant 0 : i32
    %c0_i32_0 = arith.constant 0 : i32
    return %arg1, %c0_i32 : i32, i32
  }
  func.func @transform_7(%arg0: i32, %arg1: i32) -> (i32, i32) {
    %c0_i32 = arith.constant 0 : i32
    %c0_i32_0 = arith.constant 0 : i32
    %c0_i32_1 = arith.constant 0 : i32
    return %c0_i32, %c0_i32_0 : i32, i32
  }
  func.func @transform_8(%arg0: i32, %arg1: i32) -> (i32, i32) {
    %c0_i32 = arith.constant 0 : i32
    %c0_i32_0 = arith.constant 0 : i32
    %c0_i32_1 = arith.constant 0 : i32
    return %c0_i32, %c0_i32_0 : i32, i32
  }
  func.func @transform_9(%arg0: i32, %arg1: i32) -> (i32, i32) {
    %c0_i32 = arith.constant 0 : i32
    %c0_i32_0 = arith.constant 0 : i32
    return %arg0, %c0_i32 : i32, i32
  }
}

</mosaic_0001>

<llo_original>
// kernel: tpu_custom_call.1
$region0: #{tpu_custom_call.1}
  #allocation0 [shape = 'u32[]', space=smem, size = 0x4, offset = 0x4, fixed_abs, tag = 'smem constant byte address 0x4 - core index']
  #allocation1 [shape = 'u32[72,128]{1,0:T(1,128)}', space=vmem, size = 0x9000, scoped, tag = 'internal scratch']
  #allocation2 [shape = 'f32[32,128]{1,0:T(8,128)}', space=vmem, size = 0x4000, scoped, tag = 'scratch operand']
  %s0 = inlined_call_operand.hbm [shape: f32[2], index: 0, kind: input, shape index: {}]
  %s1 = inlined_call_operand.hbm [shape: bf16[64,64], index: 1, kind: input, shape index: {}]
  %s2 = inlined_call_operand.vmem [shape: f32[64,8], index: 2, kind: input, shape index: {}]
  %s3 = inlined_call_operand.vmem [shape: f32[8,64], index: 3, kind: input, shape index: {}]
  %s4 = inlined_call_operand.vmem [shape: f32[64,1], index: 4, kind: input, shape index: {}]
  %s5 = inlined_call_operand.vmem [shape: f32[1,64], index: 5, kind: input, shape index: {}]
  %s6 = inlined_call_operand.hbm [shape: bf16[64,128], index: 6, kind: input, shape index: {}]
  %s7 = inlined_call_operand.vmem [shape: f32[128,128], index: 7, kind: input, shape index: {}]
  %s8 = inlined_call_operand.vmem [shape: f32[1,128], index: 8, kind: input, shape index: {}]
  %s9 = inlined_call_operand.hbm [shape: bf16[64,128], index: 9, kind: output, shape index: {}]
  %s10 = sld [smem:[#allocation0]]
  $region89: #{tpu_custom_call.1} parent=0
    _
  %s12 = ssub.s32 1, %s10
  %s13 = scalar_select 0, %s12, %s10
  $region1: #{tpu_custom_call.1} parent=0
    #allocation3 [shape = 'u8[512]{0}', space=smem, size = 0x200, scoped, tag = 'input window, operand 0, single buffered']
    #allocation4 [shape = 's32[2]{0}', space=sflag, size = 0x8, scoped, tag = 'scoped memory for tpu_custom_call.1']
    #allocation5 [shape = 's32[2]{0}', space=sflag, size = 0x8, scoped, tag = 'scoped memory for tpu_custom_call.1']
    #allocation6 [shape = 's32[2]{0}', space=sflag, size = 0x8, scoped, tag = 'scoped memory for tpu_custom_call.1']
    #allocation7 [shape = 'u8[16384]{0}', space=vmem, size = 0x4000, scoped, tag = 'input window, operand 1']
    #allocation8 [shape = 'u8[16384]{0}', space=vmem, size = 0x4000, scoped, tag = 'input window, operand 6, single buffered']
    #allocation9 [shape = 's32[1]{0}', space=sflag, size = 0x4, scoped, tag = 'scoped memory for tpu_custom_call.1']
    #allocation10 [shape = 'u8[16384]{0}', space=vmem, size = 0x4000, scoped, tag = 'output window, operand 0']
    %14 = vsyncpa [#allocation6], 0
    %15 = vsyncpa [#allocation4], 0
    %s16 = scalar_lea.sflag [#allocation4], 1
    %17 = vsyncpa %s16, 0
    %18 = vsyncpa [#allocation9], 0
    %19 = vsyncpa [#allocation5], 0
    %s20 = scalar_lea.sflag [#allocation5], 1
    %21 = vsyncpa %s20, 0
    loop: start=0, step=1, limit=4
    $region2: #{tpu_custom_call.1} parent=1 // loop_pre_header
      _
    $region3: #{tpu_custom_call.1} parent=1 // loop_header
      %s23 = sphi 0, %s27
      %p24 = scmp.ge.s32.totalorder %s23, 4
      %s30 = sphi 0, %s42
      %s31 = sphi 0, %s38
      %s32 = sphi 0, %s30
      %s33 = sphi 0, %s31
      %s34 = sphi 0, %s32
      %s35 = sphi 0, %s33
      %s43 = sphi 0, %s43
      %s45 = sphi 0, %s43
      %s46 = sphi 0, %s45
      %s60 = sphi 0, %s46
      %s68 = sphi 0, %s70
      %s71 = sphi 0, %s68
      %s72 = sphi 0, %s71
      %s88 = sphi 0, %s72
      %s94 = sphi 0, %s96
      %s97 = sphi 0, %s94
      %s98 = sphi 0, %s97
      %s114 = sphi 0, %s98
      %s120 = sphi 0, %s122
      %s123 = sphi 0, %s120
      %s124 = sphi 0, %s123
      %s140 = sphi 0, %s124
      %s146 = sphi 0, %s148
      %s149 = sphi 0, %s146
      %s150 = sphi 0, %s149
      %s166 = sphi 0, %s150
      %s172 = sphi 0, %s174
      %s175 = sphi 0, %s172
      %s176 = sphi 0, %s175
      %s192 = sphi 0, %s176
      %s198 = sphi 0, %s200
      %s201 = sphi 0, %s198
      %s202 = sphi 0, %s201
      %s218 = sphi 0, %s202
      %s222 = sphi 0, %s222
      %s224 = sphi 0, %s222
      %s225 = sphi 0, %s224
      %s239 = sphi 0, %s225
      %s243 = sphi 0, %s243
      %s245 = sphi 0, %s243
      %s246 = sphi 0, %s245
      %s260 = sphi 0, %s246
      %s266 = sphi 0, %s268
      %s269 = sphi 0, %s266
      %s270 = sphi 0, %s269
      %s286 = sphi 0, %s270
    $region4: #{tpu_custom_call.1} parent=1 // loop_header_branch
      %26 = sbr.rel (%p24) target = $region8
    $region5: #{tpu_custom_call.1} parent=1 // loop_body
      %s28 = ssub.s32 %s23, 1
      %s29 = ssub.s32 %s23, 2
      %s36 = sadd.s32 1, %s31
      %p37 = scmp.ge.s32.totalorder %s36, 1
      %s38 = scalar_select %p37, 0, %s36
      %s39 = sadd.s32 1, %s30
      %s40 = scalar_select %p37, %s39, %s30
      %p41 = scmp.ge.s32.totalorder %s40, 2
      %s42 = scalar_select %p41, 0, %s40
      %s44 = sadd.s32 %s43, 1
      %p47 = scmp.eq.s32.totalorder %s23, 1
      %p48 = scmp.ne.s32.totalorder %s43, %s45
      %p49 = scmp.eq.s32.totalorder %s23, 0
      %p50 = por %p48, %p49
      %p51 = scmp.ne.s32.totalorder %s43, %s45
      %p52 = scmp.eq.s32.totalorder %s28, 1
      %p53 = por %p51, %p52
      %p54 = scmp.ne.s32.totalorder %s45, %s46
      %p55 = scmp.eq.s32.totalorder %s28, 0
      %p56 = por %p54, %p55
      %p57 = scmp.ne.s32.totalorder %s45, %s46
      %p58 = scmp.eq.s32.totalorder %s29, 1
      %p59 = por %p57, %p58
      %p61 = scmp.ne.s32.totalorder %s46, %s60
      %p62 = scmp.eq.s32.totalorder %s29, 0
      %p63 = por %p61, %p62
      %s64 = ssub.s32 %s30, %s42
      %s65 = ssub.s32 %s31, %s38
      %s66 = sor.u32 %s64, %s65
      %p67 = scmp.eq.s32.totalorder %s66, 0
      %s69 = sadd.s32 %s68, 1
      %s70 = scalar_select %p67, %s68, %s69
      %p73 = pneg %p67
      %p74 = scmp.eq.s32.totalorder %s23, 1
      %p75 = por %p73, %p74
      %p76 = scmp.ne.s32.totalorder %s68, %s71
      %p77 = scmp.eq.s32.totalorder %s23, 0
      %p78 = por %p76, %p77
      %p79 = scmp.ne.s32.totalorder %s68, %s71
      %p80 = scmp.eq.s32.totalorder %s28, 1
      %p81 = por %p79, %p80
      %p82 = scmp.ne.s32.totalorder %s71, %s72
      %p83 = scmp.eq.s32.totalorder %s28, 0
      %p84 = por %p82, %p83
      %p85 = scmp.ne.s32.totalorder %s71, %s72
      %p86 = scmp.eq.s32.totalorder %s29, 1
      %p87 = por %p85, %p86
      %p89 = scmp.ne.s32.totalorder %s72, %s88
      %p90 = scmp.eq.s32.totalorder %s29, 0
      %p91 = por %p89, %p90
      %s92 = ssub.s32 %s30, %s42
      %p93 = scmp.eq.s32.totalorder %s92, 0
      %s95 = sadd.s32 %s94, 1
      %s96 = scalar_select %p93, %s94, %s95
      %p99 = pneg %p93
      %p100 = scmp.eq.s32.totalorder %s23, 1
      %p101 = por %p99, %p100
      %p102 = scmp.ne.s32.totalorder %s94, %s97
      %p103 = scmp.eq.s32.totalorder %s23, 0
      %p104 = por %p102, %p103
      %p105 = scmp.ne.s32.totalorder %s94, %s97
      %p106 = scmp.eq.s32.totalorder %s28, 1
      %p107 = por %p105, %p106
      %p108 = scmp.ne.s32.totalorder %s97, %s98
      %p109 = scmp.eq.s32.totalorder %s28, 0
      %p110 = por %p108, %p109
      %p111 = scmp.ne.s32.totalorder %s97, %s98
      %p112 = scmp.eq.s32.totalorder %s29, 1
      %p113 = por %p111, %p112
      %p115 = scmp.ne.s32.totalorder %s98, %s114
      %p116 = scmp.eq.s32.totalorder %s29, 0
      %p117 = por %p115, %p116
      %s118 = ssub.s32 %s31, %s38
      %p119 = scmp.eq.s32.totalorder %s118, 0
      %s121 = sadd.s32 %s120, 1
      %s122 = scalar_select %p119, %s120, %s121
      %p125 = pneg %p119
      %p126 = scmp.eq.s32.totalorder %s23, 1
      %p127 = por %p125, %p126
      %p128 = scmp.ne.s32.totalorder %s120, %s123
      %p129 = scmp.eq.s32.totalorder %s23, 0
      %p130 = por %p128, %p129
      %p131 = scmp.ne.s32.totalorder %s120, %s123
      %p132 = scmp.eq.s32.totalorder %s28, 1
      %p133 = por %p131, %p132
      %p134 = scmp.ne.s32.totalorder %s123, %s124
      %p135 = scmp.eq.s32.totalorder %s28, 0
      %p136 = por %p134, %p135
      %p137 = scmp.ne.s32.totalorder %s123, %s124
      %p138 = scmp.eq.s32.totalorder %s29, 1
      %p139 = por %p137, %p138
      %p141 = scmp.ne.s32.totalorder %s124, %s140
      %p142 = scmp.eq.s32.totalorder %s29, 0
      %p143 = por %p141, %p142
      %s144 = ssub.s32 %s30, %s42
      %p145 = scmp.eq.s32.totalorder %s144, 0
      %s147 = sadd.s32 %s146, 1
      %s148 = scalar_select %p145, %s146, %s147
      %p151 = pneg %p145
      %p152 = scmp.eq.s32.totalorder %s23, 1
      %p153 = por %p151, %p152
      %p154 = scmp.ne.s32.totalorder %s146, %s149
      %p155 = scmp.eq.s32.totalorder %s23, 0
      %p156 = por %p154, %p155
      %p157 = scmp.ne.s32.totalorder %s146, %s149
      %p158 = scmp.eq.s32.totalorder %s28, 1
      %p159 = por %p157, %p158
      %p160 = scmp.ne.s32.totalorder %s149, %s150
      %p161 = scmp.eq.s32.totalorder %s28, 0
      %p162 = por %p160, %p161
      %p163 = scmp.ne.s32.totalorder %s149, %s150
      %p164 = scmp.eq.s32.totalorder %s29, 1
      %p165 = por %p163, %p164
      %p167 = scmp.ne.s32.totalorder %s150, %s166
      %p168 = scmp.eq.s32.totalorder %s29, 0
      %p169 = por %p167, %p168
      %s170 = ssub.s32 %s31, %s38
      %p171 = scmp.eq.s32.totalorder %s170, 0
      %s173 = sadd.s32 %s172, 1
      %s174 = scalar_select %p171, %s172, %s173
      %p177 = pneg %p171
      %p178 = scmp.eq.s32.totalorder %s23, 1
      %p179 = por %p177, %p178
      %p180 = scmp.ne.s32.totalorder %s172, %s175
      %p181 = scmp.eq.s32.totalorder %s23, 0
      %p182 = por %p180, %p181
      %p183 = scmp.ne.s32.totalorder %s172, %s175
      %p184 = scmp.eq.s32.totalorder %s28, 1
      %p185 = por %p183, %p184
      %p186 = scmp.ne.s32.totalorder %s175, %s176
      %p187 = scmp.eq.s32.totalorder %s28, 0
      %p188 = por %p186, %p187
      %p189 = scmp.ne.s32.totalorder %s175, %s176
      %p190 = scmp.eq.s32.totalorder %s29, 1
      %p191 = por %p189, %p190
      %p193 = scmp.ne.s32.totalorder %s176, %s192
      %p194 = scmp.eq.s32.totalorder %s29, 0
      %p195 = por %p193, %p194
      %s196 = ssub.s32 %s31, %s38
      %p197 = scmp.eq.s32.totalorder %s196, 0
      %s199 = sadd.s32 %s198, 1
      %s200 = scalar_select %p197, %s198, %s199
      %p203 = pneg %p197
      %p204 = scmp.eq.s32.totalorder %s23, 1
      %p205 = por %p203, %p204
      %p206 = scmp.ne.s32.totalorder %s198, %s201
      %p207 = scmp.eq.s32.totalorder %s23, 0
      %p208 = por %p206, %p207
      %p209 = scmp.ne.s32.totalorder %s198, %s201
      %p210 = scmp.eq.s32.totalorder %s28, 1
      %p211 = por %p209, %p210
      %p212 = scmp.ne.s32.totalorder %s201, %s202
      %p213 = scmp.eq.s32.totalorder %s28, 0
      %p214 = por %p212, %p213
      %p215 = scmp.ne.s32.totalorder %s201, %s202
      %p216 = scmp.eq.s32.totalorder %s29, 1
      %p217 = por %p215, %p216
      %p219 = scmp.ne.s32.totalorder %s202, %s218
      %p220 = scmp.eq.s32.totalorder %s29, 0
      %p221 = por %p219, %p220
      %s223 = sadd.s32 %s222, 1
      %p226 = scmp.eq.s32.totalorder %s23, 1
      %p227 = scmp.ne.s32.totalorder %s222, %s224
      %p228 = scmp.eq.s32.totalorder %s23, 0
      %p229 = por %p227, %p228
      %p230 = scmp.ne.s32.totalorder %s222, %s224
      %p231 = scmp.eq.s32.totalorder %s28, 1
      %p232 = por %p230, %p231
      %p233 = scmp.ne.s32.totalorder %s224, %s225
      %p234 = scmp.eq.s32.totalorder %s28, 0
      %p235 = por %p233, %p234
      %p236 = scmp.ne.s32.totalorder %s224, %s225
      %p237 = scmp.eq.s32.totalorder %s29, 1
      %p238 = por %p236, %p237
      %p240 = scmp.ne.s32.totalorder %s225, %s239
      %p241 = scmp.eq.s32.totalorder %s29, 0
      %p242 = por %p240, %p241
      %s244 = sadd.s32 %s243, 1
      %p247 = scmp.eq.s32.totalorder %s23, 1
      %p248 = scmp.ne.s32.totalorder %s243, %s245
      %p249 = scmp.eq.s32.totalorder %s23, 0
      %p250 = por %p248, %p249
      %p251 = scmp.ne.s32.totalorder %s243, %s245
      %p252 = scmp.eq.s32.totalorder %s28, 1
      %p253 = por %p251, %p252
      %p254 = scmp.ne.s32.totalorder %s245, %s246
      %p255 = scmp.eq.s32.totalorder %s28, 0
      %p256 = por %p254, %p255
      %p257 = scmp.ne.s32.totalorder %s245, %s246
      %p258 = scmp.eq.s32.totalorder %s29, 1
      %p259 = por %p257, %p258
      %p261 = scmp.ne.s32.totalorder %s246, %s260
      %p262 = scmp.eq.s32.totalorder %s29, 0
      %p263 = por %p261, %p262
      %s264 = ssub.s32 %s30, %s42
      %p265 = scmp.eq.s32.totalorder %s264, 0
      %s267 = sadd.s32 %s266, 1
      %s268 = scalar_select %p265, %s266, %s267
      %p271 = pneg %p265
      %p272 = scmp.eq.s32.totalorder %s23, 1
      %p273 = por %p271, %p272
      %p274 = scmp.ne.s32.totalorder %s266, %s269
      %p275 = scmp.eq.s32.totalorder %s23, 0
      %p276 = por %p274, %p275
      %p277 = scmp.ne.s32.totalorder %s266, %s269
      %p278 = scmp.eq.s32.totalorder %s28, 1
      %p279 = por %p277, %p278
      %p280 = scmp.ne.s32.totalorder %s269, %s270
      %p281 = scmp.eq.s32.totalorder %s28, 0
      %p282 = por %p280, %p281
      %p283 = scmp.ne.s32.totalorder %s269, %s270
      %p284 = scmp.eq.s32.totalorder %s29, 1
      %p285 = por %p283, %p284
      %p287 = scmp.ne.s32.totalorder %s270, %s286
      %p288 = scmp.eq.s32.totalorder %s29, 0
      %p289 = por %p287, %p288
      %p290 = scmp.le.s32.totalorder 1, %s23
      %p291 = scmp.lt.s32.totalorder %s23, 3
      %p292 = pnand %p290, %p291
      %p293 = pneg %p292
      // Predicated region
      $region9: #{tpu_custom_call.1} parent=5 // pred_check
        _
      $region10: #{tpu_custom_call.1} parent=5 // pred_check_branch
        %295 = sbr.rel (%p292) target = $region12
      $region11: #{tpu_custom_call.1} parent=5 // pred_region
        %s296 = ssub.s32 %s23, 1
        // Predicated region
        $region13: #{tpu_custom_call.1} parent=11 // pred_check
          %p297 = pneg %p56
        $region14: #{tpu_custom_call.1} parent=11 // pred_check_branch
          %299 = sbr.rel (%p297) target = $region16
        $region15: #{tpu_custom_call.1} parent=11 // pred_region
          %301 = vsyncadd [#allocation6], 0
          %s303 = sshll.u32 %s0, 4
          %s304 = int_to_ptr.hbm [resolvable:$true] %s303
          %306 = dma.hbm_to_smem %s304, 16, [#allocation3], [#allocation6]
        $region16: #{tpu_custom_call.1} parent=11 // pred_fallthru
          _
        // Predicated region
        $region17: #{tpu_custom_call.1} parent=11 // pred_check
          %p307 = pneg %p136
        $region18: #{tpu_custom_call.1} parent=11 // pred_check_branch
          %309 = sbr.rel (%p307) target = $region20
        $region19: #{tpu_custom_call.1} parent=11 // pred_region
          %p310 = scmp.lt.s32.totalorder %s33, 0
          %s311 = scalar_select %p310, %s33, 0
          %s312 = smul.addr %s311, 8
          %s313 = scalar_lea.vmem %s3, %s312
        $region20: #{tpu_custom_call.1} parent=11 // pred_fallthru
          _
        // Predicated region
        $region21: #{tpu_custom_call.1} parent=11 // pred_check
          %p314 = pneg %p188
        $region22: #{tpu_custom_call.1} parent=11 // pred_check_branch
          %316 = sbr.rel (%p314) target = $region24
        $region23: #{tpu_custom_call.1} parent=11 // pred_region
          %p317 = scmp.lt.s32.totalorder %s33, 0
          %s318 = scalar_select %p317, %s33, 0
          %s319 = scalar_lea.vmem %s5, %s318
        $region24: #{tpu_custom_call.1} parent=11 // pred_fallthru
          _
        // Predicated region
        $region25: #{tpu_custom_call.1} parent=11 // pred_check
          %p320 = pneg %p214
        $region26: #{tpu_custom_call.1} parent=11 // pred_check_branch
          %322 = sbr.rel (%p320) target = $region28
        $region27: #{tpu_custom_call.1} parent=11 // pred_region
          %s323 = smul.u32 8, %s33
          %325 = vsyncadd [#allocation9], 0
          %s326 = smul.addr %s323, 4
          %s327 = scalar_lea.hbm %s6, %s326
          %s328 = sshll.u32 %s327, 4
          %s329 = int_to_ptr.hbm [resolvable:$true] %s328
          %s330 = sshll.u32 [#allocation8], 4
          %s331 = int_to_ptr.vmem [resolvable:$true] %s330
          %336 = dma.hbm_to_vmem [thread:$0]  %s329, 512, %s331, [#allocation9], 64, 64, 4
        $region28: #{tpu_custom_call.1} parent=11 // pred_fallthru
          _
        // Predicated region
        $region29: #{tpu_custom_call.1} parent=11 // pred_check
          %p337 = pneg %p235
        $region30: #{tpu_custom_call.1} parent=11 // pred_check_branch
          %339 = sbr.rel (%p337) target = $region32
        $region31: #{tpu_custom_call.1} parent=11 // pred_region
          _
        $region32: #{tpu_custom_call.1} parent=11 // pred_fallthru
          _
        // Predicated region
        $region33: #{tpu_custom_call.1} parent=11 // pred_check
          %p340 = pneg %p256
        $region34: #{tpu_custom_call.1} parent=11 // pred_check_branch
          %342 = sbr.rel (%p340) target = $region36
        $region35: #{tpu_custom_call.1} parent=11 // pred_region
          _
        $region36: #{tpu_custom_call.1} parent=11 // pred_fallthru
          _
      $region12: #{tpu_custom_call.1} parent=5 // pred_fallthru
        _
      %p343 = scmp.lt.s32.totalorder %s23, 2
      // Predicated region
      $region37: #{tpu_custom_call.1} parent=5 // pred_check
        %p344 = pneg %p343
      $region38: #{tpu_custom_call.1} parent=5 // pred_check_branch
        %346 = sbr.rel (%p344) target = $region40
      $region39: #{tpu_custom_call.1} parent=5 // pred_region
        // Predicated region
        $region41: #{tpu_custom_call.1} parent=39 // pred_check
          %p347 = pneg %p78
        $region42: #{tpu_custom_call.1} parent=39 // pred_check_branch
          %349 = sbr.rel (%p347) target = $region44
        $region43: #{tpu_custom_call.1} parent=39 // pred_region
          %s350 = sand.u32 %s68, 1
          %s351 = scalar_lea.sflag [#allocation4], %s350
          %s352 = sand.u32 %s68, 1
          %s353 = smul.addr %s352, 16
          %s354 = scalar_lea.vmem [#allocation7], %s353
          %s355 = smul.u32 4, %s30
          %357 = vsyncadd %s351, 0
          %s358 = sadd.s32 %s31, %s355
          %s359 = smul.addr %s358, 4
          %s360 = scalar_lea.hbm %s1, %s359
          %s361 = sshll.u32 %s360, 4
          %s362 = int_to_ptr.hbm [resolvable:$true] %s361
          %s363 = sshll.u32 %s354, 4
          %s364 = int_to_ptr.vmem [resolvable:$true] %s363
          %369 = dma.hbm_to_vmem [thread:$0]  %s362, 256, %s364, %s351, 64, 64, 4
        $region44: #{tpu_custom_call.1} parent=39 // pred_fallthru
          _
        // Predicated region
        $region45: #{tpu_custom_call.1} parent=39 // pred_check
          %p370 = pneg %p104
        $region46: #{tpu_custom_call.1} parent=39 // pred_check_branch
          %372 = sbr.rel (%p370) target = $region48
        $region47: #{tpu_custom_call.1} parent=39 // pred_region
          %s373 = smul.u32 4, %s30
          %p374 = scmp.lt.s32.totalorder %s373, 7
          %s375 = scalar_select %p374, %s373, 7
          %s376 = smul.addr %s375, 8
          %s377 = scalar_lea.vmem %s2, %s376
          %s378 = smul.u32 4, %s30
        $region48: #{tpu_custom_call.1} parent=39 // pred_fallthru
          _
        // Predicated region
        $region49: #{tpu_custom_call.1} parent=39 // pred_check
          %p379 = pneg %p156
        $region50: #{tpu_custom_call.1} parent=39 // pred_check_branch
          %381 = sbr.rel (%p379) target = $region52
        $region51: #{tpu_custom_call.1} parent=39 // pred_region
          %s382 = smul.u32 4, %s30
          %p383 = scmp.lt.s32.totalorder %s382, 7
          %s384 = scalar_select %p383, %s382, 7
          %s385 = smul.addr %s384, 8
          %s386 = scalar_lea.vmem %s4, %s385
          %s387 = smul.u32 4, %s30
        $region52: #{tpu_custom_call.1} parent=39 // pred_fallthru
          _
      $region40: #{tpu_custom_call.1} parent=5 // pred_fallthru
        _
      %p388 = scmp.le.s32.totalorder 1, %s23
      %p389 = scmp.lt.s32.totalorder %s23, 3
      %p390 = pnand %p388, %p389
      %p391 = pneg %p390
      // Predicated region
      $region53: #{tpu_custom_call.1} parent=5 // pred_check
        _
      $region54: #{tpu_custom_call.1} parent=5 // pred_check_branch
        %393 = sbr.rel (%p390) target = $region56
      $region55: #{tpu_custom_call.1} parent=5 // pred_region
        %s394 = ssub.s32 %s23, 1
        // Predicated region
        $region57: #{tpu_custom_call.1} parent=55 // pred_check
          %p395 = pneg %p56
        $region58: #{tpu_custom_call.1} parent=55 // pred_check_branch
          %397 = sbr.rel (%p395) target = $region60
        $region59: #{tpu_custom_call.1} parent=55 // pred_region
          %399 = dma.done [#allocation6], 16
        $region60: #{tpu_custom_call.1} parent=55 // pred_fallthru
          _
        %s400 = sand.u32 %s71, 1
        %s401 = scalar_lea.sflag [#allocation4], %s400
        %s402 = sand.u32 %s71, 1
        %s403 = smul.addr %s402, 16
        %s404 = scalar_lea.vmem [#allocation7], %s403
        // Predicated region
        $region61: #{tpu_custom_call.1} parent=55 // pred_check
          %p405 = pneg %p84
        $region62: #{tpu_custom_call.1} parent=55 // pred_check_branch
          %407 = sbr.rel (%p405) target = $region64
        $region63: #{tpu_custom_call.1} parent=55 // pred_region
          %409 = dma.done %s401, 256
        $region64: #{tpu_custom_call.1} parent=55 // pred_fallthru
          _
        // Predicated region
        $region65: #{tpu_custom_call.1} parent=55 // pred_check
          %p410 = pneg %p214
        $region66: #{tpu_custom_call.1} parent=55 // pred_check_branch
          %412 = sbr.rel (%p410) target = $region68
        $region67: #{tpu_custom_call.1} parent=55 // pred_region
          %414 = dma.done [#allocation9], 512
        $region68: #{tpu_custom_call.1} parent=55 // pred_fallthru
          _
        %415 = sfence
        %p416 = pneg %p56
        %p417 = pneg %p53
        %s418 = sand.u32 %s71, 1
        %s419 = scalar_lea.sflag [#allocation4], %s418
        %s420 = sand.u32 %s71, 1
        %s421 = smul.addr %s420, 16
        %s422 = scalar_lea.vmem [#allocation7], %s421
        %p423 = pneg %p84
        %p424 = pneg %p81
        %s425 = smul.u32 4, %s32
        %p426 = scmp.lt.s32.totalorder %s425, 7
        %s427 = scalar_select %p426, %s425, 7
        %s428 = smul.addr %s427, 8
        %s429 = scalar_lea.vmem %s2, %s428
        %p430 = pneg %p110
        %p431 = pneg %p107
        %p432 = scmp.lt.s32.totalorder %s33, 0
        %s433 = scalar_select %p432, %s33, 0
        %s434 = smul.addr %s433, 8
        %s435 = scalar_lea.vmem %s3, %s434
        %p436 = pneg %p136
        %p437 = pneg %p133
        %s438 = smul.u32 4, %s32
        %p439 = scmp.lt.s32.totalorder %s438, 7
        %s440 = scalar_select %p439, %s438, 7
        %s441 = smul.addr %s440, 8
        %s442 = scalar_lea.vmem %s4, %s441
        %p443 = pneg %p162
        %p444 = pneg %p159
        %p445 = scmp.lt.s32.totalorder %s33, 0
        %s446 = scalar_select %p445, %s33, 0
        %s447 = scalar_lea.vmem %s5, %s446
        %p448 = pneg %p188
        %p449 = pneg %p185
        %p450 = pneg %p214
        %p451 = pneg %p211
        %p452 = pneg %p235
        %p453 = pneg %p232
        %p454 = pneg %p256
        %p455 = pneg %p253
        %p456 = pneg %p282
        %p457 = pneg %p279
        %s458 = sand.u32 %s269, 1
        %s459 = scalar_lea.sflag [#allocation5], %s458
        %s460 = sand.u32 %s269, 1
        %s461 = smul.addr %s460, 16
        %s462 = scalar_lea.vmem [#allocation10], %s461
        %s463 = smul.u32 4, %s32
        %s464 = smul.u32 4, %s32
        %p465 = scmp.lt.s32.totalorder %s464, 7
        %s466 = scalar_select %p465, %s464, 7
        %s467 = smul.addr %s466, 8
        %s468 = scalar_lea.vmem %s2, %s467
        %s469 = smul.u32 4, %s32
        %p470 = scmp.lt.s32.totalorder %s33, 0
        %s471 = scalar_select %p470, %s33, 0
        %s472 = smul.addr %s471, 8
        %s473 = scalar_lea.vmem %s3, %s472
        %s474 = smul.u32 4, %s32
        %p475 = scmp.lt.s32.totalorder %s474, 7
        %s476 = scalar_select %p475, %s474, 7
        %s477 = smul.addr %s476, 8
        %s478 = scalar_lea.vmem %s4, %s477
        %s479 = smul.u32 4, %s32
        %p480 = scmp.lt.s32.totalorder %s33, 0
        %s481 = scalar_select %p480, %s33, 0
        %s482 = scalar_lea.vmem %s5, %s481
        %s483 = smul.u32 8, %s33
        %s484 = smul.u32 4, %s32
        %p486 = scmp.eq.s32.totalorder %s33, 0
        // Predicated region
        $region69: #{tpu_custom_call.1} parent=55 // pred_check
          %p487 = pneg %p486
        $region70: #{tpu_custom_call.1} parent=55 // pred_check_branch
          %489 = sbr.rel (%p487) target = $region72
        $region71: #{tpu_custom_call.1} parent=55 // pred_region
          %490 = vst [vmem:[#allocation2] sm:$0xff] 0.0
          %491 = vst [vmem:[#allocation2 + $0x8] sm:$0xff] 0.0
          %492 = vst [vmem:[#allocation2 + $0x10] sm:$0xff] 0.0
          %493 = vst [vmem:[#allocation2 + $0x18] sm:$0xff] 0.0
        $region72: #{tpu_custom_call.1} parent=55 // pred_fallthru
          _
        %s494 = sld [smem:[#allocation3]]
        %s495 = sld [smem:[#allocation3 + $0x1]]
        %v496 = vld [vmem:[%s468] sm:$0xff]
        %v497 = vld [vmem:[%s468 + $0x8] sm:$0xff]
        %v498 = vld [vmem:[%s468 + $0x10] sm:$0xff]
        %v499 = vld [vmem:[%s468 + $0x18] sm:$0xff]
        %v500 = vld [vmem:[%s473] sm:$0xff]
        %vm501 = vcmask 64512
        %v503 = vsel %vm501, %v496, 0
        %v506 = vsel %vm501, %v497, 0
        %v509 = vsel %vm501, %v498, 0
        %v512 = vsel %vm501, %v499, 0
        %514 = vmatpush.msra.mxu0 0.0
        %515 = vmatpush.msra.mxu0 0.0
        %516 = vmatpush.msra.mxu0 0.0
        %517 = vmatpush.msra.mxu0 0.0
        %518 = vmatpush.msra.mxu0 0.0
        %519 = vmatpush.msra.mxu0 0.0
        %520 = vmatpush.msra.mxu0 0.0
        %521 = vmatpush.msra.mxu0 0.0
        %522 = vmatpush.msra.mxu0 0.0
        %523 = vmatpush.msra.mxu0 0.0
        %524 = vmatpush.msra.mxu0 0.0
        %525 = vmatpush.msra.mxu0 0.0
        %526 = vmatpush.msra.mxu0 0.0
        %527 = vmatpush.msra.mxu0 0.0
        %528 = vmatpush.msra.mxu0 0.0
        %529 = vmatpush.msra.mxu0 %v500
        %530 = vmatmul.f32.gmra.mxu0 %v503
        %v531 = vpop.f32.mrf.mxu0
        %v532 = vadd.f32 0.0, %v531
        %533 = vmatmul.f32.gmra.mxu0 %v506
        %v534 = vpop.f32.mrf.mxu0
        %v535 = vadd.f32 0.0, %v534
        %536 = vmatmul.f32.gmra.mxu0 %v509
        %v537 = vpop.f32.mrf.mxu0
        %v538 = vadd.f32 0.0, %v537
        %539 = vmatmul.f32.gmra.mxu0 %v512
        %v540 = vpop.f32.mrf.mxu0
        %v541 = vadd.f32 0.0, %v540
        %542 = vdwg.mxu0
        %v543 = vld [vmem:[%s478] sm:$0xff]
        %v544 = vld [vmem:[%s478 + $0x8] sm:$0xff]
        %v545 = vld [vmem:[%s478 + $0x10] sm:$0xff]
        %v546 = vld [vmem:[%s478 + $0x18] sm:$0xff]
        %v547 = vld [vmem:[%s482] sm:$0x1]
        %549 = vset.pattern.permute.xlu0 0
        %550 = vperm.xlu0 %549, %v543
        %v551 = vpop.permute.xlu0 %550
        %554 = vset.pattern.permute.xlu0 0
        %555 = vperm.xlu0 %554, %v544
        %v556 = vpop.permute.xlu0 %555
        %559 = vset.pattern.permute.xlu0 0
        %560 = vperm.xlu0 %559, %v545
        %v561 = vpop.permute.xlu0 %560
        %564 = vset.pattern.permute.xlu0 0
        %565 = vperm.xlu0 %564, %v546
        %v566 = vpop.permute.xlu0 %565
        %v569 = vperm.slane %v547, 0
        %v571 = vadd.f32 %v551, %v569
        %v572 = vadd.f32 %v556, %v569
        %v573 = vadd.f32 %v561, %v569
        %v574 = vadd.f32 %v566, %v569
        %v575 = vmul.f32 %v532, 2.0
        %v576 = vmul.f32 %v535, 2.0
        %v577 = vmul.f32 %v538, 2.0
        %v578 = vmul.f32 %v541, 2.0
        %v579 = vsub.f32 %v571, %v575
        %v580 = vsub.f32 %v572, %v576
        %v581 = vsub.f32 %v573, %v577
        %v582 = vsub.f32 %v574, %v578
        %v583 = vmax.f32 %v579, 0.0
        %v584 = vmax.f32 %v580, 0.0
        %v585 = vmax.f32 %v581, 0.0
        %v586 = vmax.f32 %v582, 0.0
        %v587 = vrsqrt.pop %v583
        %v588 = vmul.f32 %v587, %v583
        %v589 = vmul.f32 %v588, %v587
        %v590 = vmul.f32 0.5, %v589
        %v591 = vsub.f32 1.5, %v590
        %v592 = vmul.f32 %v587, %v591
        %v593 = vmul.f32 %v583, %v592
        %vm594 = vcmp.eq.f32.partialorder %v583, inf
        %v595 = vsel %vm594, %v583, %v593
        %vm596 = vcmp.eq.f32.partialorder %v583, 0.0
        %v597 = vand.u32 %v583, 2147483648
        %v598 = vsel %vm596, %v597, %v595
        %v599 = vrsqrt.pop %v584
        %v600 = vmul.f32 %v599, %v584
        %v601 = vmul.f32 %v600, %v599
        %v602 = vmul.f32 0.5, %v601
        %v603 = vsub.f32 1.5, %v602
        %v604 = vmul.f32 %v599, %v603
        %v605 = vmul.f32 %v584, %v604
        %vm606 = vcmp.eq.f32.partialorder %v584, inf
        %v607 = vsel %vm606, %v584, %v605
        %vm608 = vcmp.eq.f32.partialorder %v584, 0.0
        %v609 = vand.u32 %v584, 2147483648
        %v610 = vsel %vm608, %v609, %v607
        %v611 = vrsqrt.pop %v585
        %v612 = vmul.f32 %v611, %v585
        %v613 = vmul.f32 %v612, %v611
        %v614 = vmul.f32 0.5, %v613
        %v615 = vsub.f32 1.5, %v614
        %v616 = vmul.f32 %v611, %v615
        %v617 = vmul.f32 %v585, %v616
        %vm618 = vcmp.eq.f32.partialorder %v585, inf
        %v619 = vsel %vm618, %v585, %v617
        %vm620 = vcmp.eq.f32.partialorder %v585, 0.0
        %v621 = vand.u32 %v585, 2147483648
        %v622 = vsel %vm620, %v621, %v619
        %v623 = vrsqrt.pop %v586
        %v624 = vmul.f32 %v623, %v586
        %v625 = vmul.f32 %v624, %v623
        %v626 = vmul.f32 0.5, %v625
        %v627 = vsub.f32 1.5, %v626
        %v628 = vmul.f32 %v623, %v627
        %v629 = vmul.f32 %v586, %v628
        %vm630 = vcmp.eq.f32.partialorder %v586, inf
        %v631 = vsel %vm630, %v586, %v629
        %vm632 = vcmp.eq.f32.partialorder %v586, 0.0
        %v633 = vand.u32 %v586, 2147483648
        %v634 = vsel %vm632, %v633, %v631
        %v635 = vstv %s494
        %v636 = vmul.f32 %v635, %v598
        %v637 = vmul.f32 %v635, %v610
        %v638 = vmul.f32 %v635, %v622
        %v639 = vmul.f32 %v635, %v634
        %v640 = vstv %s495
        %v641 = vadd.f32 %v636, %v640
        %v642 = vadd.f32 %v637, %v640
        %v643 = vadd.f32 %v638, %v640
        %v644 = vadd.f32 %v639, %v640
        %v645 = vmul.f32 %v641, 0.5
        %v646 = vmul.f32 %v642, 0.5
        %v647 = vmul.f32 %v643, 0.5
        %v648 = vmul.f32 %v644, 0.5
        %v649 = vtanh.pop %v645
        %v650 = vtanh.pop %v646
        %v651 = vtanh.pop %v647
        %v652 = vtanh.pop %v648
        %v653 = vadd.f32 %v649, 1.0
        %v654 = vadd.f32 %v650, 1.0
        %v655 = vadd.f32 %v651, 1.0
        %v656 = vadd.f32 %v652, 1.0
        %v657 = vmul.f32 %v653, 0.5
        %v658 = vmul.f32 %v654, 0.5
        %v659 = vmul.f32 %v655, 0.5
        %v660 = vmul.f32 %v656, 0.5
        %v661 = vld [vmem:[%s404] sm:$0xf]
        %v662 = vld [vmem:[%s404 + $0x4] sm:$0xf]
        %v663 = vld [vmem:[%s404 + $0x8] sm:$0xf]
        %v664 = vld [vmem:[%s404 + $0xc] sm:$0xf]
        %v665 = vunpack.c.l.bf16 %v661
        %v666 = vunpack.c.l.bf16 %v662
        %v667 = vunpack.c.l.bf16 %v663
        %v668 = vunpack.c.l.bf16 %v664
        %v669 = vmul.f32 %v657, %v665
        %v670 = vmul.f32 %v658, %v666
        %v671 = vmul.f32 %v659, %v667
        %v672 = vmul.f32 %v660, %v668
        %v673 = vpack.c.bf16 %v670, %v669
        %v674 = vpack.c.bf16 %v672, %v671
        %v675 = vld [vmem:[#allocation2] sm:$0xff]
        %v676 = vld [vmem:[#allocation2 + $0x8] sm:$0xff]
        %v677 = vld [vmem:[#allocation2 + $0x10] sm:$0xff]
        %v678 = vld [vmem:[#allocation2 + $0x18] sm:$0xff]
        %v679 = vld [vmem:[#allocation8] sm:$0xf]
        %v680 = vld [vmem:[#allocation8 + $0x4] sm:$0xf]
        %v681 = vld [vmem:[#allocation8 + $0x8] sm:$0xf]
        %v682 = vld [vmem:[#allocation8 + $0xc] sm:$0xf]
        %v683 = vld [vmem:[#allocation8 + $0x10] sm:$0xf]
        %v684 = vld [vmem:[#allocation8 + $0x14] sm:$0xf]
        %v685 = vld [vmem:[#allocation8 + $0x18] sm:$0xf]
        %v686 = vld [vmem:[#allocation8 + $0x1c] sm:$0xf]
        %v695 = vunpack.c.l.b16 %v679
        %v696 = vunpack.c.l.b16 %v680
        %v697 = vunpack.c.l.b16 %v681
        %v698 = vunpack.c.l.b16 %v682
        %v699 = vunpack.c.l.b16 %v683
        %v700 = vunpack.c.l.b16 %v684
        %v701 = vunpack.c.l.b16 %v685
        %v702 = vunpack.c.l.b16 %v686
        %v703 = vpack.c.b16 %v696, %v695
        %v704 = vpack.c.b16 %v698, %v697
        %v705 = vpack.c.b16 %v700, %v699
        %v706 = vpack.c.b16 %v702, %v701
        %vm711 = vcmask 523264
        %v713 = vsel %vm711, %v673, 0
        %v716 = vsel %vm711, %v674, 0
        %718 = vmatpush.bf16.msra.mxu0 0
        %719 = vmatpush.bf16.msra.mxu0 0
        %720 = vmatpush.bf16.msra.mxu0 0
        %721 = vmatpush.bf16.msra.mxu0 0
        %722 = vmatpush.bf16.msra.mxu0 %v706
        %723 = vmatpush.bf16.msra.mxu0 %v705
        %724 = vmatpush.bf16.msra.mxu0 %v704
        %725 = vmatpush.bf16.msra.mxu0 %v703
        %726 = vmatmul.bf16.gmra.mxu0 %v713
        %v727 = vpop.f32.mrf.mxu0
        %v728 = vadd.f32 0.0, %v727
        %v729 = vpop.f32.mrf.mxu0
        %v730 = vadd.f32 0.0, %v729
        %731 = vmatmul.bf16.gmra.mxu0 %v716
        %v732 = vpop.f32.mrf.mxu0
        %v733 = vadd.f32 0.0, %v732
        %v734 = vpop.f32.mrf.mxu0
        %v735 = vadd.f32 0.0, %v734
        %736 = vdwg.mxu0
        %v737 = vadd.f32 %v675, %v728
        %v738 = vadd.f32 %v676, %v730
        %v739 = vadd.f32 %v677, %v733
        %v740 = vadd.f32 %v678, %v735
        %741 = vst [vmem:[#allocation2] sm:$0xff] %v737
        %742 = vst [vmem:[#allocation2 + $0x8] sm:$0xff] %v738
        %743 = vst [vmem:[#allocation2 + $0x10] sm:$0xff] %v739
        %744 = vst [vmem:[#allocation2 + $0x18] sm:$0xff] %v740
        // Predicated region
        $region73: #{tpu_custom_call.1} parent=55 // pred_check
          %p745 = pneg %p486
        $region74: #{tpu_custom_call.1} parent=55 // pred_check_branch
          %747 = sbr.rel (%p745) target = $region76
        $region75: #{tpu_custom_call.1} parent=55 // pred_region
          %v748 = vld [vmem:[#allocation2] sm:$0xff]
          %v749 = vld [vmem:[#allocation2 + $0x8] sm:$0xff]
          %v750 = vld [vmem:[#allocation2 + $0x10] sm:$0xff]
          %v751 = vld [vmem:[#allocation2 + $0x18] sm:$0xff]
          %v752 = vld [vmem:[%s7] sm:$0xff]
          %v753 = vld [vmem:[%s7 + $0x8] sm:$0xff]
          %v754 = vld [vmem:[%s7 + $0x10] sm:$0xff]
          %v755 = vld [vmem:[%s7 + $0x18] sm:$0xff]
          %v756 = vld [vmem:[%s7 + $0x20] sm:$0xff]
          %v757 = vld [vmem:[%s7 + $0x28] sm:$0xff]
          %v758 = vld [vmem:[%s7 + $0x30] sm:$0xff]
          %v759 = vld [vmem:[%s7 + $0x38] sm:$0xff]
          %v760 = vld [vmem:[%s7 + $0x40] sm:$0xff]
          %v761 = vld [vmem:[%s7 + $0x48] sm:$0xff]
          %v762 = vld [vmem:[%s7 + $0x50] sm:$0xff]
          %v763 = vld [vmem:[%s7 + $0x58] sm:$0xff]
          %v764 = vld [vmem:[%s7 + $0x60] sm:$0xff]
          %v765 = vld [vmem:[%s7 + $0x68] sm:$0xff]
          %v766 = vld [vmem:[%s7 + $0x70] sm:$0xff]
          %v767 = vld [vmem:[%s7 + $0x78] sm:$0xff]
          %v768 = vld [vmem:[%s8] sm:$0x1]
          %v770 = vperm.slane %v768, 0
          %772 = vmatpush.msra.mxu0 %v767
          %773 = vmatpush.msra.mxu0 %v766
          %774 = vmatpush.msra.mxu0 %v765
          %775 = vmatpush.msra.mxu0 %v764
          %776 = vmatpush.msra.mxu0 %v763
          %777 = vmatpush.msra.mxu0 %v762
          %778 = vmatpush.msra.mxu0 %v761
          %779 = vmatpush.msra.mxu0 %v760
          %780 = vmatpush.msra.mxu0 %v759
          %781 = vmatpush.msra.mxu0 %v758
          %782 = vmatpush.msra.mxu0 %v757
          %783 = vmatpush.msra.mxu0 %v756
          %784 = vmatpush.msra.mxu0 %v755
          %785 = vmatpush.msra.mxu0 %v754
          %786 = vmatpush.msra.mxu0 %v753
          %787 = vmatpush.msra.mxu0 %v752
          %788 = vmatmul.f32.gmra.mxu0 %v748
          %v789 = vpop.f32.mrf.mxu0
          %v790 = vadd.f32 %v770, %v789
          %791 = vmatmul.f32.gmra.mxu0 %v749
          %v792 = vpop.f32.mrf.mxu0
          %v793 = vadd.f32 %v770, %v792
          %794 = vmatmul.f32.gmra.mxu0 %v750
          %v795 = vpop.f32.mrf.mxu0
          %v796 = vadd.f32 %v770, %v795
          %797 = vmatmul.f32.gmra.mxu0 %v751
          %v798 = vpop.f32.mrf.mxu0
          %v799 = vadd.f32 %v770, %v798
          %800 = vdwg.mxu0
          %v801 = vpack.c.bf16 %v790, %v790
          %v802 = vpack.c.bf16 %v793, %v793
          %v803 = vpack.c.bf16 %v796, %v796
          %v804 = vpack.c.bf16 %v799, %v799
          %805 = vst [vmem:[%s462] sm:$0xf] %v801
          %806 = vst [vmem:[%s462 + $0x4] sm:$0xf] %v802
          %807 = vst [vmem:[%s462 + $0x8] sm:$0xf] %v803
          %808 = vst [vmem:[%s462 + $0xc] sm:$0xf] %v804
        $region76: #{tpu_custom_call.1} parent=55 // pred_fallthru
          _
        %s809 = sand.u32 %s269, 1
        %s810 = scalar_lea.sflag [#allocation5], %s809
        %s811 = sand.u32 %s269, 1
        %s812 = smul.addr %s811, 16
        %s813 = scalar_lea.vmem [#allocation10], %s812
        // Predicated region
        $region77: #{tpu_custom_call.1} parent=55 // pred_check
          %p814 = pneg %p279
        $region78: #{tpu_custom_call.1} parent=55 // pred_check_branch
          %816 = sbr.rel (%p814) target = $region80
        $region79: #{tpu_custom_call.1} parent=55 // pred_region
          %s817 = smul.u32 4, %s32
          %819 = vsyncadd %s810, 0
          %s820 = smul.addr %s817, 4
          %s821 = scalar_lea.hbm %s9, %s820
          %s822 = sshll.u32 %s813, 4
          %s823 = int_to_ptr.vmem [resolvable:$true] %s822
          %s824 = sshll.u32 %s821, 4
          %s825 = int_to_ptr.hbm [resolvable:$true] %s824
          %830 = dma.vmem_to_hbm [thread:$0]  %s823, 256, %s825, %s810, 64, 64, 4
        $region80: #{tpu_custom_call.1} parent=55 // pred_fallthru
          _
      $region56: #{tpu_custom_call.1} parent=5 // pred_fallthru
        _
      %p831 = scmp.le.s32.totalorder 2, %s23
      // Predicated region
      $region81: #{tpu_custom_call.1} parent=5 // pred_check
        %p832 = pneg %p831
      $region82: #{tpu_custom_call.1} parent=5 // pred_check_branch
        %834 = sbr.rel (%p832) target = $region84
      $region83: #{tpu_custom_call.1} parent=5 // pred_region
        %s835 = ssub.s32 %s23, 2
        // Predicated region
        $region85: #{tpu_custom_call.1} parent=83 // pred_check
          %p836 = pneg %p285
        $region86: #{tpu_custom_call.1} parent=83 // pred_check_branch
          %838 = sbr.rel (%p836) target = $region88
        $region87: #{tpu_custom_call.1} parent=83 // pred_region
          %s839 = sand.u32 %s270, 1
          %s840 = scalar_lea.sflag [#allocation5], %s839
          %s841 = sand.u32 %s270, 1
          %s842 = smul.addr %s841, 16
          %s843 = scalar_lea.vmem [#allocation10], %s842
          %845 = dma.done %s840, 256
        $region88: #{tpu_custom_call.1} parent=83 // pred_fallthru
          _
      $region84: #{tpu_custom_call.1} parent=5 // pred_fallthru
        _
    $region6: #{tpu_custom_call.1} parent=1 // loop_footer
      %s27 = sadd.s32 1, %s23
    $region7: #{tpu_custom_call.1} parent=1 // loop_footer_branch
      %22 = sbr.rel target = $region3
    $region8: #{tpu_custom_call.1} parent=1 // loop_exit
      _
    %846 = vsyncpa [#allocation4], 1
    %s847 = scalar_lea.sflag [#allocation4], 1
    %848 = vsyncpa %s847, 1
    %849 = vsyncpa [#allocation9], 1
    %850 = vsyncpa [#allocation5], 1
    %s851 = scalar_lea.sflag [#allocation5], 1
    %852 = vsyncpa %s851, 1
    %853 = vsyncpa [#allocation6], 1
    %s854 = scalar_lea.sflag [#allocation6], 1
    %855 = vsyncpa %s854, 1

</llo_original>
